<compile_context>
chip_gen: v7x
topology: tpu7x:2x2x1
jax: 0.10.0
libtpu: 0.0.40
codegen_flags: <defaults>
</compile_context>

<pallas_src>
import functools

import jax
import jax.numpy as jnp
from jax import lax
from jax.experimental import pallas as pl
from jax.experimental.pallas import tpu as pltpu


def _round_up(v, m):
    return pl.cdiv(v, m) * m


def _vmem_capacity_bytes():
    """Physical VMEM per TensorCore; conservative fallback if the query fails."""
    try:
        cap = getattr(pltpu.get_tpu_info(), "vmem_capacity_bytes", None)
        if cap:
            return int(cap)
    except Exception:
        pass
    return 64 * 1024 * 1024  # v7x per-core VMEM (smallest of v5e/v6e/v7x)


# ---------------------------------------------------------------------------
# Single-pass kernel: the whole batch of one lane tile is resident in VMEM.
# ---------------------------------------------------------------------------
def _bn_onepass_kernel(x_ref, gamma_ref, beta_ref, o_ref, *, eps, inv_n):
    # Every column of the (N, TC) block is an independent (channel, component)
    # pair, so per-column batch-norm over axis 0 is exactly the reference op.
    xf = x_ref[...].astype(jnp.float32)

    # One-pass statistics around a per-column pivot (row 0): avoids the
    # E[x^2] - E[x]^2 cancellation for offset-heavy data; compute is free
    # (the kernel is HBM-bound).
    pivot = xf[0:1, :]
    xs = xf - pivot
    m1 = jnp.sum(xs, axis=0, keepdims=True) * inv_n           # (1, TC)
    m2 = jnp.sum(xs * xs, axis=0, keepdims=True) * inv_n      # (1, TC)
    var = jnp.maximum(m2 - m1 * m1, 0.0)
    mean = m1 + pivot
    inv_std = lax.rsqrt(var + eps)                            # EUP slot, ~free

    # Fold normalize + affine into a single FMA per element.
    scale = gamma_ref[...].astype(jnp.float32) * inv_std
    shift = beta_ref[...].astype(jnp.float32) - mean * scale
    o_ref[...] = (xf * scale + shift).astype(o_ref.dtype)


# ---------------------------------------------------------------------------
# Two-pass fallback for large N: pass 1 = per-column mean/var, pass 2 = apply.
# ---------------------------------------------------------------------------
def _bn_stats_kernel(x_ref, mean_ref, var_ref, *, n_total, row_block):
    r_idx = pl.program_id(1)

    @pl.when(r_idx == 0)
    def _():
        mean_ref[...] = jnp.zeros_like(mean_ref)
        var_ref[...] = jnp.zeros_like(var_ref)

    xf = x_ref[...].astype(jnp.float32)
    # Mask out-of-range rows of the edge row block (they must not pollute the
    # column sums).  Garbage edge *lanes* only affect their own columns and
    # are dropped on write.
    row = lax.broadcasted_iota(jnp.int32, xf.shape, 0) + r_idx * row_block
    xf = jnp.where(row < n_total, xf, 0.0)

    mean_ref[...] += jnp.sum(xf, axis=0, keepdims=True)        # running sum
    var_ref[...] += jnp.sum(xf * xf, axis=0, keepdims=True)    # running sumsq

    @pl.when(r_idx == pl.num_programs(1) - 1)
    def _():
        inv_n = 1.0 / n_total
        m = mean_ref[...] * inv_n
        v = jnp.maximum(var_ref[...] * inv_n - m * m, 0.0)
        mean_ref[...] = m
        var_ref[...] = v


def _bn_apply_kernel(x_ref, mean_ref, var_ref, gamma_ref, beta_ref, o_ref, *, eps):
    xf = x_ref[...].astype(jnp.float32)
    inv_std = lax.rsqrt(var_ref[...] + eps)
    scale = gamma_ref[...].astype(jnp.float32) * inv_std
    shift = beta_ref[...].astype(jnp.float32) - mean_ref[...] * scale
    o_ref[...] = (xf * scale + shift).astype(o_ref.dtype)


# ---------------------------------------------------------------------------
# Wrappers
# ---------------------------------------------------------------------------
def _one_pass(x2, gamma, beta, eps, tc, vmem_limit):
    n, l = x2.shape
    itemsize = jnp.dtype(x2.dtype).itemsize
    grid = (pl.cdiv(l, tc),)

    cost = pl.CostEstimate(
        flops=7 * n * l,
        transcendentals=l,
        bytes_accessed=2 * n * l * itemsize + 2 * l * itemsize,
    )

    return pl.pallas_call(
        functools.partial(_bn_onepass_kernel, eps=float(eps), inv_n=1.0 / n),
        out_shape=jax.ShapeDtypeStruct((n, l), x2.dtype),
        grid=grid,
        in_specs=[
            pl.BlockSpec((n, tc), lambda c: (0, c)),
            pl.BlockSpec((1, tc), lambda c: (0, c)),
            pl.BlockSpec((1, tc), lambda c: (0, c)),
        ],
        out_specs=pl.BlockSpec((n, tc), lambda c: (0, c)),
        compiler_params=pltpu.CompilerParams(
            dimension_semantics=("parallel",),
            vmem_limit_bytes=vmem_limit,
        ),
        cost_estimate=cost,
    )(x2, gamma, beta)


def _two_pass(x2, gamma, beta, eps, budget, vmem_limit):
    n, l = x2.shape
    itemsize = jnp.dtype(x2.dtype).itemsize
    l128 = _round_up(l, 128)
    n_cap = _round_up(n, 8)

    tc = min(l128, 512)                        # lane-dense, modest lane tile

    # ---- pass 1: per-column mean / var over an "arbitrary" row axis --------
    row_bytes = tc * (2 * itemsize + 8)        # dbuf x block + f32 working copy
    tn = max(8, min((budget // row_bytes) // 8 * 8, n_cap))
    grid1 = (pl.cdiv(l, tc), pl.cdiv(n, tn))

    mean, var = pl.pallas_call(
        functools.partial(_bn_stats_kernel, n_total=n, row_block=tn),
        out_shape=(
            jax.ShapeDtypeStruct((1, l), jnp.float32),
            jax.ShapeDtypeStruct((1, l), jnp.float32),
        ),
        grid=grid1,
        in_specs=[pl.BlockSpec((tn, tc), lambda c, r: (r, c))],
        out_specs=(
            pl.BlockSpec((1, tc), lambda c, r: (0, c)),
            pl.BlockSpec((1, tc), lambda c, r: (0, c)),
        ),
        compiler_params=pltpu.CompilerParams(
            dimension_semantics=("parallel", "arbitrary"),
            vmem_limit_bytes=vmem_limit,
        ),
    )(x2)

    # ---- pass 2: normalize + affine -----------------------------------------
    row_bytes2 = tc * (4 * itemsize + 8)       # dbuf x + dbuf out + f32 copy
    tn2 = max(8, min((budget // row_bytes2) // 8 * 8, n_cap))
    grid2 = (pl.cdiv(l, tc), pl.cdiv(n, tn2))

    return pl.pallas_call(
        functools.partial(_bn_apply_kernel, eps=float(eps)),
        out_shape=jax.ShapeDtypeStruct((n, l), x2.dtype),
        grid=grid2,
        in_specs=[
            pl.BlockSpec((tn2, tc), lambda c, r: (r, c)),
            pl.BlockSpec((1, tc), lambda c, r: (0, c)),
            pl.BlockSpec((1, tc), lambda c, r: (0, c)),
            pl.BlockSpec((1, tc), lambda c, r: (0, c)),
            pl.BlockSpec((1, tc), lambda c, r: (0, c)),
        ],
        out_specs=pl.BlockSpec((tn2, tc), lambda c, r: (r, c)),
        compiler_params=pltpu.CompilerParams(
            dimension_semantics=("parallel", "parallel"),
            vmem_limit_bytes=vmem_limit,
        ),
    )(x2, mean, var, gamma, beta)


def naive_complex_batchnorm1d(x, gamma_r, beta_r, gamma_i, beta_i, eps=1e-5,
                              *, vmem_budget_bytes=None):
    """x: (N, C, 2) float array. Returns (N, C, 2) (training-mode forward)."""
    n, c, two = x.shape
    assert two == 2
    l = 2 * c
    itemsize = jnp.dtype(x.dtype).itemsize

    # Free view: real/imag interleaved along the lane axis; interleave the
    # per-component affine params the same way.
    x2 = x.reshape(n, l)
    gamma = jnp.stack([gamma_r, gamma_i], axis=-1).reshape(1, l)
    beta = jnp.stack([beta_r, beta_i], axis=-1).reshape(1, l)

    # Per-generation VMEM sizing: raise the scoped limit explicitly and keep
    # the tile-selection budget well inside it.
    #   v5e/v6e (128 MiB physical): limit 96 MiB, budget 48 MiB
    #   v7x     ( 64 MiB physical): limit 48 MiB, budget 24 MiB
    vmem_limit = min(_vmem_capacity_bytes() * 3 // 4, 96 * 1024 * 1024)
    budget = int(vmem_budget_bytes) if vmem_budget_bytes else vmem_limit // 2

    l128 = _round_up(l, 128)
    # Per-lane-column footprint of the single-pass path: double-buffered input
    # and output blocks plus the in-kernel f32 working copies.
    col_bytes = n * (4 * itemsize + 8)
    max_tc = (budget // col_bytes) // 128 * 128

    if max_tc >= 128:
        # Single pass: full batch of each lane tile resident.  Cap TC so the
        # (parallel) lane grid keeps >= ~4 steps when 2C is wide enough
        # (software pipelining; work for both v7x TensorCores), but never
        # below 512 lanes unless 2C itself is small.
        lane_cap = max(512, _round_up(pl.cdiv(l128, 4), 128))
        tc = min(l128, max_tc, lane_cap)
        if tc >= l:
            tc = l   # one full-width block (block == full extent is legal)
        out = _one_pass(x2, gamma, beta, eps, tc, vmem_limit)
    else:
        # Full-N column tiles no longer fit the budget: two-pass fallback.
        out = _two_pass(x2, gamma, beta, eps, budget, vmem_limit)

    return out.reshape(n, c, 2)   # free view back to (N, C, 2)


def _reference(x, gamma_r, beta_r, gamma_i, beta_i, eps=1e-5):
    def bn(v, g, b):  # v: (N, C)
        m = jnp.mean(v, axis=0, keepdims=True)
        var = jnp.mean((v - m) ** 2, axis=0, keepdims=True)
        return (v - m) / jnp.sqrt(var + eps) * g + b

    re = bn(x[:, :, 0], gamma_r, beta_r)
    im = bn(x[:, :, 1], gamma_i, beta_i)
    return jnp.stack([re, im], axis=-1)


if __name__ == "__main__":
    key = jax.random.PRNGKey(0)

    def make_case(k, n, c, offset=0.0):
        kx, kgr, kbr, kgi, kbi = jax.random.split(k, 5)
        x = jax.random.normal(kx, (n, c, 2), dtype=jnp.float32) + offset
        gamma_r = 1.0 + 0.1 * jax.random.normal(kgr, (c,), dtype=jnp.float32)
        beta_r = 0.1 * jax.random.normal(kbr, (c,), dtype=jnp.float32)
        gamma_i = 1.0 + 0.1 * jax.random.normal(kgi, (c,), dtype=jnp.float32)
        beta_i = 0.1 * jax.random.normal(kbi, (c,), dtype=jnp.float32)
        return x, gamma_r, beta_r, gamma_i, beta_i

    k1, k2, k3 = jax.random.split(key, 3)

    # Case 1: small demo shape (single-pass path, full-width block, 2C=64).
    a1 = make_case(k1, 8, 32)
    o1 = jax.block_until_ready(naive_complex_batchnorm1d(*a1))
    r1 = _reference(*a1)
    assert o1.shape == (8, 32, 2)
    assert float(jnp.max(jnp.abs(o1 - r1))) < 1e-4

    # Case 2: C not a multiple of 64 -> 2C=200; a small forced budget yields
    # TC=128 tiles so the last lane block exercises Pallas edge masking
    # (garbage lanes stay confined / writes dropped), with no host-side pad.
    a2 = make_case(k2, 16, 100, offset=3.0)
    o2 = jax.block_until_ready(
        naive_complex_batchnorm1d(*a2, vmem_budget_bytes=64 * 1024))
    r2 = _reference(*a2)
    assert float(jnp.max(jnp.abs(o2 - r2))) < 1e-4

    # Case 3: forced tiny budget triggers the large-N two-pass fallback
    # (stats accumulated over 8 row blocks + edge-lane masking).
    a3 = make_case(k3, 64, 100, offset=-2.0)
    o3 = jax.block_until_ready(
        naive_complex_batchnorm1d(*a3, vmem_budget_bytes=32 * 1024))
    r3 = _reference(*a3)
    assert float(jnp.max(jnp.abs(o3 - r3))) < 1e-4

    print("KERNEL_OK")
</pallas_src>

<mosaic_0001>
module attributes {stable_mosaic.version = 11 : i64} {
  func.func @_bn_onepass_kernel(%arg0: i32, %arg1: memref<8x64xf32, #tpu.memory_space<vmem>>, %arg2: memref<1x64xf32, #tpu.memory_space<vmem>>, %arg3: memref<1x64xf32, #tpu.memory_space<vmem>>, %arg4: memref<8x64xf32, #tpu.memory_space<vmem>>) attributes {dimension_semantics = [#tpu.dimension_semantics<parallel>], iteration_bounds = array<i64: 1>, scalar_prefetch = 0 : i64, scratch_operands = 0 : i64, tpu.core_type = #tpu.core_type<tc>, window_params = [{transform_indices = @transform_0, window_bounds = array<i64: 8, 64>}, {transform_indices = @transform_1, window_bounds = array<i64: 1, 64>}, {transform_indices = @transform_2, window_bounds = array<i64: 1, 64>}, {transform_indices = @transform_3, window_bounds = array<i64: 8, 64>}]} {
    %c0 = arith.constant 0 : index
    %c0_0 = arith.constant 0 : index
    %0 = vector.load %arg1[%c0, %c0_0] : memref<8x64xf32, #tpu.memory_space<vmem>>, vector<8x64xf32>
    %1 = vector.extract_strided_slice %0 {offsets = [0, 0], sizes = [1, 64], strides = [1, 1]} : vector<8x64xf32> to vector<1x64xf32>
    %2 = vector.broadcast %1 : vector<1x64xf32> to vector<8x64xf32>
    %3 = arith.subf %0, %2 : vector<8x64xf32>
    %cst = arith.constant dense<0.000000e+00> : vector<64xf32>
    %4 = vector.multi_reduction <add>, %3, %cst [0] : vector<8x64xf32> to vector<64xf32>
    %5 = vector.shape_cast %4 : vector<64xf32> to vector<1x64xf32>
    %cst_1 = arith.constant 1.250000e-01 : f32
    %6 = vector.broadcast %cst_1 : f32 to vector<1x64xf32>
    %7 = arith.mulf %5, %6 : vector<1x64xf32>
    %8 = arith.mulf %3, %3 : vector<8x64xf32>
    %cst_2 = arith.constant dense<0.000000e+00> : vector<64xf32>
    %9 = vector.multi_reduction <add>, %8, %cst_2 [0] : vector<8x64xf32> to vector<64xf32>
    %10 = vector.shape_cast %9 : vector<64xf32> to vector<1x64xf32>
    %cst_3 = arith.constant 1.250000e-01 : f32
    %11 = vector.broadcast %cst_3 : f32 to vector<1x64xf32>
    %12 = arith.mulf %10, %11 : vector<1x64xf32>
    %13 = arith.mulf %7, %7 : vector<1x64xf32>
    %14 = arith.subf %12, %13 : vector<1x64xf32>
    %cst_4 = arith.constant 0.000000e+00 : f32
    %15 = vector.broadcast %cst_4 : f32 to vector<1x64xf32>
    %16 = arith.maximumf %14, %15 : vector<1x64xf32>
    %17 = arith.addf %7, %1 : vector<1x64xf32>
    %cst_5 = arith.constant 9.99999974E-6 : f32
    %18 = vector.broadcast %cst_5 : f32 to vector<1x64xf32>
    %19 = arith.addf %16, %18 : vector<1x64xf32>
    %20 = math.rsqrt %19 : vector<1x64xf32>
    %c0_6 = arith.constant 0 : index
    %c0_7 = arith.constant 0 : index
    %21 = vector.load %arg2[%c0_6, %c0_7] : memref<1x64xf32, #tpu.memory_space<vmem>>, vector<1x64xf32>
    %22 = arith.mulf %21, %20 : vector<1x64xf32>
    %c0_8 = arith.constant 0 : index
    %c0_9 = arith.constant 0 : index
    %23 = vector.load %arg3[%c0_8, %c0_9] : memref<1x64xf32, #tpu.memory_space<vmem>>, vector<1x64xf32>
    %24 = arith.mulf %17, %22 : vector<1x64xf32>
    %25 = arith.subf %23, %24 : vector<1x64xf32>
    %26 = vector.broadcast %22 : vector<1x64xf32> to vector<8x64xf32>
    %27 = arith.mulf %0, %26 : vector<8x64xf32>
    %28 = vector.broadcast %25 : vector<1x64xf32> to vector<8x64xf32>
    %29 = arith.addf %27, %28 : vector<8x64xf32>
    %c0_10 = arith.constant 0 : index
    %c0_11 = arith.constant 0 : index
    %30 = vector.load %arg4[%c0_10, %c0_11] : memref<8x64xf32, #tpu.memory_space<vmem>>, vector<8x64xf32>
    tpu.vector_store %arg4[%c0_10, %c0_11], %29 {strides = array<i32>} : memref<8x64xf32, #tpu.memory_space<vmem>>, vector<8x64xf32>,
    return
  }
  func.func @transform_0(%arg0: i32) -> (i32, i32) {
    %c0_i32 = arith.constant 0 : i32
    %c0_i32_0 = arith.constant 0 : i32
    return %c0_i32, %arg0 : i32, i32
  }
  func.func @transform_1(%arg0: i32) -> (i32, i32) {
    %c0_i32 = arith.constant 0 : i32
    %c0_i32_0 = arith.constant 0 : i32
    return %c0_i32, %arg0 : i32, i32
  }
  func.func @transform_2(%arg0: i32) -> (i32, i32) {
    %c0_i32 = arith.constant 0 : i32
    %c0_i32_0 = arith.constant 0 : i32
    return %c0_i32, %arg0 : i32, i32
  }
  func.func @transform_3(%arg0: i32) -> (i32, i32) {
    %c0_i32 = arith.constant 0 : i32
    %c0_i32_0 = arith.constant 0 : i32
    return %c0_i32, %arg0 : i32, i32
  }
}

</mosaic_0001>

<llo_original>
// kernel: tpu_custom_call.1
$region0: #{tpu_custom_call.1}
  #allocation0 [shape = 'u32[]', space=smem, size = 0x4, offset = 0x4, fixed_abs, tag = 'smem constant byte address 0x4 - core index']
  #allocation1 [shape = 'u32[144,128]{1,0:T(1,128)}', space=vmem, size = 0x12000, scoped, tag = 'internal scratch']
  %s0 = inlined_call_operand.hbm [shape: f32[8,64], index: 0, kind: input, shape index: {}]
  %s1 = inlined_call_operand.vmem [shape: f32[1,64], index: 1, kind: input, shape index: {}]
  %s2 = inlined_call_operand.vmem [shape: f32[1,64], index: 2, kind: input, shape index: {}]
  %s3 = inlined_call_operand.hbm [shape: f32[8,64], index: 3, kind: output, shape index: {}]
  %s4 = sld [smem:[#allocation0]]
  $region26: #{tpu_custom_call.1} parent=0
    _
  %s6 = ssub.s32 1, %s4
  %s7 = scalar_select 0, %s6, %s4
  $region1: #{tpu_custom_call.1} parent=0
    #allocation2 [shape = 'u8[4096]{0}', space=vmem, size = 0x1000, scoped, tag = 'input window, operand 0, single buffered']
    #allocation3 [shape = 's32[1]{0}', space=sflag, size = 0x4, scoped, tag = 'scoped memory for tpu_custom_call.1']
    #allocation4 [shape = 's32[1]{0}', space=sflag, size = 0x4, scoped, tag = 'scoped memory for tpu_custom_call.1']
    #allocation5 [shape = 'u8[4096]{0}', space=vmem, size = 0x1000, scoped, tag = 'output window, operand 0, single buffered']
    %8 = vsyncpa [#allocation3], 0
    %9 = vsyncpa [#allocation4], 0
    // Predicated region
    $region2: #{tpu_custom_call.1} parent=1 // pred_check
      _
    $region3: #{tpu_custom_call.1} parent=1 // pred_check_branch
      %11 = sbr.rel (0) target = $region5
    $region4: #{tpu_custom_call.1} parent=1 // pred_region
      %s13 = ssub.s32 128, 128
      %14 = vsyncadd [#allocation3], %s13
      %s16 = sshll.u32 [#allocation2], 4
      %s17 = int_to_ptr.vmem [resolvable:$true] %s16
      %19 = dma.hbm_to_vmem [thread:$0]  %s0, 128, %s17, [#allocation3]
    $region5: #{tpu_custom_call.1} parent=1 // pred_fallthru
      _
    // Predicated region
    $region6: #{tpu_custom_call.1} parent=1 // pred_check
      _
    $region7: #{tpu_custom_call.1} parent=1 // pred_check_branch
      %21 = sbr.rel (0) target = $region9
    $region8: #{tpu_custom_call.1} parent=1 // pred_region
      _
    $region9: #{tpu_custom_call.1} parent=1 // pred_fallthru
      _
    // Predicated region
    $region10: #{tpu_custom_call.1} parent=1 // pred_check
      _
    $region11: #{tpu_custom_call.1} parent=1 // pred_check_branch
      %23 = sbr.rel (0) target = $region13
    $region12: #{tpu_custom_call.1} parent=1 // pred_region
      _
    $region13: #{tpu_custom_call.1} parent=1 // pred_fallthru
      _
    // Predicated region
    $region14: #{tpu_custom_call.1} parent=1 // pred_check
      _
    $region15: #{tpu_custom_call.1} parent=1 // pred_check_branch
      %25 = sbr.rel (0) target = $region17
    $region16: #{tpu_custom_call.1} parent=1 // pred_region
      %26 = dma.done [#allocation3], 128
    $region17: #{tpu_custom_call.1} parent=1 // pred_fallthru
      _
    %v27 = vld [vmem:[#allocation2] sm:$0xff]
    %v28 = vlaneseq
    %v29 = vshrl.u32 %v28, 7
    %v30 = vsub.s32 0, %v29
    %v31 = vrot.slane %v27, %v30
    %v32 = vsub.f32 %v27, %v31
    %vm33 = vcmask 523264
    %v34 = vsel %vm33, %v32, 0.0
    %v35 = vrot.slane %v34, 4
    %v36 = vadd.f32 %v34, %v35
    %v37 = vrot.slane %v36, 2
    %v38 = vadd.f32 %v36, %v37
    %v39 = vrot.slane %v38, 1
    %v40 = vadd.f32 %v38, %v39
    %v41 = vmul.f32 %v40, 0.125
    %v42 = vmul.f32 %v32, %v32
    %v43 = vsel %vm33, %v42, 0.0
    %v44 = vrot.slane %v43, 4
    %v45 = vadd.f32 %v43, %v44
    %v46 = vrot.slane %v45, 2
    %v47 = vadd.f32 %v45, %v46
    %v48 = vrot.slane %v47, 1
    %v49 = vadd.f32 %v47, %v48
    %v50 = vmul.f32 %v49, 0.125
    %v51 = vmul.f32 %v41, %v41
    %v52 = vsub.f32 %v50, %v51
    %v53 = vmax.f32 %v52, 0.0
    %v54 = vadd.f32 %v41, %v27
    %v55 = vadd.f32 %v53, 1e-05
    %v56 = vrsqrt.pop %v55
    %v57 = vld [vmem:[%s1] sm:$0x1]
    %v58 = vmul.f32 %v57, %v56
    %v59 = vld [vmem:[%s2] sm:$0x1]
    %v60 = vmul.f32 %v54, %v58
    %v61 = vsub.f32 %v59, %v60
    %v63 = vlaneseq
    %v64 = vshrl.u32 %v63, 7
    %v65 = vsub.s32 0, %v64
    %v66 = vrot.slane %v58, %v65
    %v68 = vmul.f32 %v27, %v66
    %v70 = vlaneseq
    %v71 = vshrl.u32 %v70, 7
    %v72 = vsub.s32 0, %v71
    %v73 = vrot.slane %v61, %v72
    %v75 = vadd.f32 %v68, %v73
    %76 = vst.msk [vmem:[#allocation5] sm:$0xff] %vm33, %v75
    // Predicated region
    $region18: #{tpu_custom_call.1} parent=1 // pred_check
      _
    $region19: #{tpu_custom_call.1} parent=1 // pred_check_branch
      %78 = sbr.rel (0) target = $region21
    $region20: #{tpu_custom_call.1} parent=1 // pred_region
      %s80 = ssub.s32 128, 128
      %81 = vsyncadd [#allocation4], %s80
      %s83 = sshll.u32 [#allocation5], 4
      %s84 = int_to_ptr.vmem [resolvable:$true] %s83
      %86 = dma.vmem_to_hbm [thread:$0]  %s84, 128, %s3, [#allocation4]
    $region21: #{tpu_custom_call.1} parent=1 // pred_fallthru
      _
    // Predicated region
    $region22: #{tpu_custom_call.1} parent=1 // pred_check
      _
    $region23: #{tpu_custom_call.1} parent=1 // pred_check_branch
      %88 = sbr.rel (0) target = $region25
    $region24: #{tpu_custom_call.1} parent=1 // pred_region
      %89 = dma.done [#allocation4], 128
    $region25: #{tpu_custom_call.1} parent=1 // pred_fallthru
      _
    %90 = vsyncpa [#allocation3], 1
    %91 = vsyncpa [#allocation4], 1

</llo_original>
